<compile_context>
chip_gen: v7x
topology: tpu7x:2x2x1
jax: 0.10.0
libtpu: 0.0.40
codegen_flags: <defaults>
</compile_context>

<pallas_src>
import functools

import numpy as np
import jax
import jax.numpy as jnp
from jax import lax
from jax.experimental import pallas as pl
from jax.experimental.pallas import tpu as pltpu


def _round_up(x, m):
    return (x + m - 1) // m * m


# ----------------------------------------------------------------------------------
# Fused kernel: propagation (n_layers of G @ E with running mean) + gather + score.
# ----------------------------------------------------------------------------------
def _lightgcn_fused_kernel(g_ref, e0_ref, ids_ref, out_ref, *, n_layers):
    """
    g_ref  : (N_pad, N_pad)  bf16  normalized adjacency (dense stand-in for sparse.mm)
    e0_ref : (N_pad, D_pad)  f32   concat([user_emb, item_emb]), zero-padded
    ids_ref: (2*B_pad, 1)    i32   [user row ids ; item row ids (offset by num_users)]
    out_ref: (1, B_pad)      f32   gamma, lane-dense
    """
    g = g_ref[...]                      # bf16, VMEM-resident for the whole kernel
    e0 = e0_ref[...]                    # f32

    # ---- propagation: E_{l+1} = G @ E_l ; accumulate sum_l E_l in f32 -------------
    def layer_body(_, carry):
        cur, acc = carry
        nxt = jnp.dot(g, cur.astype(jnp.bfloat16),
                      preferred_element_type=jnp.float32)      # bf16 MXU, f32 result
        return nxt, acc + nxt                                  # f32 accumulation (VPU)

    if n_layers > 0:
        _, acc = lax.fori_loop(0, n_layers, layer_body, (e0, e0), unroll=True)
    else:
        acc = e0
    light = acc * (1.0 / float(n_layers + 1))                  # mean over (n_layers+1) embs

    # ---- fused gather (single one-hot matmul) + pairwise score epilogue -----------
    two_b = ids_ref.shape[0]
    b_pad = two_b // 2
    n_pad = g_ref.shape[0]
    d_pad = e0_ref.shape[1]

    col = lax.broadcasted_iota(jnp.int32, (two_b, n_pad), 1)
    sel = (col == ids_ref[...]).astype(jnp.float32)            # (2B, N) one-hot rows
    gathered = jnp.dot(sel, light, preferred_element_type=jnp.float32)   # (2B, D)
    u_emb = gathered[:b_pad]                                    # static sublane slices
    i_emb = gathered[b_pad:]

    # gamma[b] = <u_emb[b], i_emb[b]>, emitted lane-dense as (1, B_pad):
    # ones(1, D) contracted against (u_emb * i_emb) over D.
    prod = u_emb * i_emb                                        # (B_pad, D_pad) f32
    ones_row = jnp.ones((1, d_pad), jnp.float32)
    gamma = lax.dot_general(ones_row, prod, (((1,), (1,)), ((), ())),
                            preferred_element_type=jnp.float32)  # (1, B_pad)
    out_ref[...] = gamma.astype(out_ref.dtype)


# ----------------------------------------------------------------------------------
# Wrapper: padding to lane/sublane-friendly shapes + single pallas_call.
# ----------------------------------------------------------------------------------
def lightgcn_forward(user_table, item_table, graph, users, items, n_layers):
    num_users, d = user_table.shape
    num_items = item_table.shape[0]
    n = num_users + num_items
    b = users.shape[0]

    n_pad = _round_up(n, 16)                    # bf16 sublane-pack friendly node axis
    d_pad = _round_up(max(d, 128), 128)         # lane-dense latent dim
    b_pad = _round_up(b, 128)                   # lane-dense score output

    emb0 = jnp.zeros((n_pad, d_pad), jnp.float32)
    emb0 = emb0.at[:num_users, :d].set(user_table.astype(jnp.float32))
    emb0 = emb0.at[num_users:n, :d].set(item_table.astype(jnp.float32))

    g_pad = jnp.zeros((n_pad, n_pad), jnp.float32).at[:n, :n].set(graph.astype(jnp.float32))
    g_bf16 = g_pad.astype(jnp.bfloat16)         # MXU-native dtype; halves graph traffic

    # Stack user/item row ids so the gather is ONE one-hot matmul in the kernel.
    ids = jnp.zeros((2 * b_pad, 1), jnp.int32)
    ids = ids.at[:b, 0].set(users.astype(jnp.int32))
    ids = ids.at[b_pad:b_pad + b, 0].set(items.astype(jnp.int32) + num_users)

    kernel = functools.partial(_lightgcn_fused_kernel, n_layers=n_layers)

    # VMEM budget: (double-buffered) graph + E0 + ids inputs, plus f32 intermediates
    # (cur/acc/light, one-hot selector, gathered embeddings) with slack.
    vmem_need = (2 * n_pad * n_pad * 2                    # graph, bf16, x2 buffers
                 + 2 * n_pad * d_pad * 4                  # E0, f32, x2 buffers
                 + 2 * (2 * b_pad) * 128 * 4              # ids (lane-padded), x2 buffers
                 + 8 * n_pad * d_pad * 4                  # cur/acc/light + headroom
                 + 4 * (2 * b_pad) * max(n_pad, d_pad) * 4  # selector / gathered rows
                 + (1 << 21))                             # slack
    vmem_limit = int(max(min(vmem_need, 96 * 1024 * 1024), 16 * 1024 * 1024))

    gamma = pl.pallas_call(
        kernel,
        out_shape=jax.ShapeDtypeStruct((1, b_pad), jnp.float32),
        grid_spec=pltpu.PrefetchScalarGridSpec(
            num_scalar_prefetch=0,
            grid=(1,),
            in_specs=[
                pl.BlockSpec((n_pad, n_pad), lambda i: (0, 0)),     # graph (bf16)
                pl.BlockSpec((n_pad, d_pad), lambda i: (0, 0)),     # E0 (f32)
                pl.BlockSpec((2 * b_pad, 1), lambda i: (0, 0)),     # stacked ids
            ],
            out_specs=pl.BlockSpec((1, b_pad), lambda i: (0, 0)),
        ),
        compiler_params=pltpu.CompilerParams(
            dimension_semantics=("arbitrary",),
            vmem_limit_bytes=vmem_limit,
        ),
    )(g_bf16, emb0, ids)

    return gamma[0, :b]


# ----------------------------------------------------------------------------------
# Pure-JAX reference mirroring the PyTorch computer()/forward() semantics.
# ----------------------------------------------------------------------------------
def lightgcn_forward_ref(user_table, item_table, graph, users, items, n_layers):
    num_users = user_table.shape[0]
    all_emb = jnp.concatenate([user_table, item_table], axis=0)
    embs = [all_emb]
    for _ in range(n_layers):
        all_emb = graph @ all_emb
        embs.append(all_emb)
    light_out = jnp.mean(jnp.stack(embs, axis=1), axis=1)
    all_users = light_out[:num_users]
    all_items = light_out[num_users:]
    return jnp.sum(all_users[users] * all_items[items], axis=1)


if __name__ == "__main__":
    # Small synthetic configuration consistent with the module's __init__.
    num_users = 12
    num_items = 20
    latent_dim_rec = 32
    lightGCN_n_layers = 3
    batch = 8
    N = num_users + num_items

    key = jax.random.PRNGKey(0)
    k_user, k_item, k_adj, k_u, k_i = jax.random.split(key, 5)

    # pretrain == 0  ->  nn.init.normal_(std=0.1)
    user_table = (0.1 * jax.random.normal(k_user, (num_users, latent_dim_rec))).astype(jnp.float32)
    item_table = (0.1 * jax.random.normal(k_item, (num_items, latent_dim_rec))).astype(jnp.float32)

    # Deterministic synthetic bipartite interaction graph, symmetrically normalized
    # (D^-1/2 A D^-1/2), stored dense. Same role as the sparse `graph` argument.
    r = (jax.random.uniform(k_adj, (num_users, num_items)) < 0.3).astype(jnp.float32)
    adj = jnp.zeros((N, N), dtype=jnp.float32)
    adj = adj.at[:num_users, num_users:].set(r)
    adj = adj.at[num_users:, :num_users].set(r.T)
    deg = jnp.sum(adj, axis=1)
    d_inv_sqrt = jnp.where(deg > 0, 1.0 / jnp.sqrt(jnp.maximum(deg, 1e-12)), 0.0)
    graph = (d_inv_sqrt[:, None] * adj) * d_inv_sqrt[None, :]

    users = jax.random.randint(k_u, (batch,), 0, num_users)
    items = jax.random.randint(k_i, (batch,), 0, num_items)

    gamma = lightgcn_forward(user_table, item_table, graph, users, items, lightGCN_n_layers)
    gamma = jax.block_until_ready(gamma)

    gamma_ref = lightgcn_forward_ref(user_table, item_table, graph, users, items,
                                     lightGCN_n_layers)
    gamma_ref = jax.block_until_ready(gamma_ref)

    assert gamma.shape == (batch,)
    # bf16 graph / bf16 MXU propagation vs. f32 reference -> loosened tolerance.
    np.testing.assert_allclose(np.asarray(gamma), np.asarray(gamma_ref), rtol=2e-2, atol=2e-2)
    print("KERNEL_OK")
</pallas_src>

<mosaic_0001>
module attributes {stable_mosaic.version = 11 : i64} {
  func.func @_lightgcn_fused_kernel(%arg0: i32, %arg1: memref<32x32xbf16, #tpu.memory_space<vmem>>, %arg2: memref<32x128xf32, #tpu.memory_space<vmem>>, %arg3: memref<256x1xi32, #tpu.memory_space<vmem>>, %arg4: memref<1x128xf32, #tpu.memory_space<vmem>>) attributes {dimension_semantics = [#tpu.dimension_semantics<arbitrary>], iteration_bounds = array<i64: 1>, scalar_prefetch = 0 : i64, scratch_operands = 0 : i64, tpu.core_type = #tpu.core_type<tc>, window_params = [{pipeline_mode = #tpu.pipeline_mode<synchronous>, transform_indices = @transform_0, window_bounds = array<i64: 32, 32>}, {pipeline_mode = #tpu.pipeline_mode<synchronous>, transform_indices = @transform_1, window_bounds = array<i64: 32, 128>}, {pipeline_mode = #tpu.pipeline_mode<synchronous>, transform_indices = @transform_2, window_bounds = array<i64: 256, 1>}, {pipeline_mode = #tpu.pipeline_mode<synchronous>, transform_indices = @transform_3, window_bounds = array<i64: 1, 128>}]} {
    %c0 = arith.constant 0 : index
    %c0_0 = arith.constant 0 : index
    %0 = vector.load %arg1[%c0, %c0_0] : memref<32x32xbf16, #tpu.memory_space<vmem>>, vector<32x32xbf16>
    %c0_1 = arith.constant 0 : index
    %c0_2 = arith.constant 0 : index
    %1 = vector.load %arg2[%c0_1, %c0_2] : memref<32x128xf32, #tpu.memory_space<vmem>>, vector<32x128xf32>
    %c0_i32 = arith.constant 0 : i32
    %2 = arith.truncf %1 : vector<32x128xf32> to vector<32x128xbf16>
    %cst = arith.constant dense<0.000000e+00> : vector<32x128xf32>
    %3 = tpu.matmul %0, %2, %cst {dimension_numbers = #tpu.dot_dimension_numbers<[1], [0], [0], [1], [0, 0, 1, 1], [], []>} : vector<32x32xbf16>, vector<32x128xbf16>, vector<32x128xf32> -> vector<32x128xf32>
    %4 = arith.addf %1, %3 : vector<32x128xf32>
    %c1_i32 = arith.constant 1 : i32
    %5 = arith.truncf %3 : vector<32x128xf32> to vector<32x128xbf16>
    %cst_3 = arith.constant dense<0.000000e+00> : vector<32x128xf32>
    %6 = tpu.matmul %0, %5, %cst_3 {dimension_numbers = #tpu.dot_dimension_numbers<[1], [0], [0], [1], [0, 0, 1, 1], [], []>} : vector<32x32xbf16>, vector<32x128xbf16>, vector<32x128xf32> -> vector<32x128xf32>
    %7 = arith.addf %4, %6 : vector<32x128xf32>
    %c2_i32 = arith.constant 2 : i32
    %8 = arith.truncf %6 : vector<32x128xf32> to vector<32x128xbf16>
    %cst_4 = arith.constant dense<0.000000e+00> : vector<32x128xf32>
    %9 = tpu.matmul %0, %8, %cst_4 {dimension_numbers = #tpu.dot_dimension_numbers<[1], [0], [0], [1], [0, 0, 1, 1], [], []>} : vector<32x32xbf16>, vector<32x128xbf16>, vector<32x128xf32> -> vector<32x128xf32>
    %10 = arith.addf %7, %9 : vector<32x128xf32>
    %cst_5 = arith.constant 2.500000e-01 : f32
    %11 = vector.broadcast %cst_5 : f32 to vector<32x128xf32>
    %12 = arith.mulf %10, %11 : vector<32x128xf32>
    %13 = tpu.iota {dimensions = array<i32: 1>} : vector<256x32xi32>
    %c0_6 = arith.constant 0 : index
    %c0_7 = arith.constant 0 : index
    %14 = vector.load %arg3[%c0_6, %c0_7] : memref<256x1xi32, #tpu.memory_space<vmem>>, vector<256x1xi32>
    %15 = vector.broadcast %14 : vector<256x1xi32> to vector<256x32xi32>
    %16 = arith.cmpi eq, %13, %15 : vector<256x32xi32>
    %17 = arith.extui %16 : vector<256x32xi1> to vector<256x32xi32>
    %18 = arith.sitofp %17 : vector<256x32xi32> to vector<256x32xf32>
    %cst_8 = arith.constant dense<0.000000e+00> : vector<256x128xf32>
    %19 = tpu.matmul %18, %12, %cst_8 {dimension_numbers = #tpu.dot_dimension_numbers<[1], [0], [0], [1], [0, 0, 1, 1], [], []>} : vector<256x32xf32>, vector<32x128xf32>, vector<256x128xf32> -> vector<256x128xf32>
    %20 = vector.extract_strided_slice %19 {offsets = [0, 0], sizes = [128, 128], strides = [1, 1]} : vector<256x128xf32> to vector<128x128xf32>
    %21 = vector.extract_strided_slice %19 {offsets = [128, 0], sizes = [128, 128], strides = [1, 1]} : vector<256x128xf32> to vector<128x128xf32>
    %22 = arith.mulf %20, %21 : vector<128x128xf32>
    %cst_9 = arith.constant 1.000000e+00 : f32
    %23 = vector.broadcast %cst_9 : f32 to vector<1x128xf32>
    %cst_10 = arith.constant dense<0.000000e+00> : vector<1x128xf32>
    %24 = tpu.matmul %23, %22, %cst_10 {dimension_numbers = #tpu.dot_dimension_numbers<[1], [1], [0], [0], [0, 0, 1, 0], [], []>} : vector<1x128xf32>, vector<128x128xf32>, vector<1x128xf32> -> vector<1x128xf32>
    %c0_11 = arith.constant 0 : index
    %c0_12 = arith.constant 0 : index
    %25 = vector.load %arg4[%c0_11, %c0_12] : memref<1x128xf32, #tpu.memory_space<vmem>>, vector<1x128xf32>
    tpu.vector_store %arg4[%c0_11, %c0_12], %24 {strides = array<i32>} : memref<1x128xf32, #tpu.memory_space<vmem>>, vector<1x128xf32>,
    return
  }
  func.func @transform_0(%arg0: i32) -> (i32, i32) {
    %c0_i32 = arith.constant 0 : i32
    %c0_i32_0 = arith.constant 0 : i32
    %c0_i32_1 = arith.constant 0 : i32
    return %c0_i32, %c0_i32_0 : i32, i32
  }
  func.func @transform_1(%arg0: i32) -> (i32, i32) {
    %c0_i32 = arith.constant 0 : i32
    %c0_i32_0 = arith.constant 0 : i32
    %c0_i32_1 = arith.constant 0 : i32
    return %c0_i32, %c0_i32_0 : i32, i32
  }
  func.func @transform_2(%arg0: i32) -> (i32, i32) {
    %c0_i32 = arith.constant 0 : i32
    %c0_i32_0 = arith.constant 0 : i32
    %c0_i32_1 = arith.constant 0 : i32
    return %c0_i32, %c0_i32_0 : i32, i32
  }
  func.func @transform_3(%arg0: i32) -> (i32, i32) {
    %c0_i32 = arith.constant 0 : i32
    %c0_i32_0 = arith.constant 0 : i32
    %c0_i32_1 = arith.constant 0 : i32
    return %c0_i32, %c0_i32_0 : i32, i32
  }
}

</mosaic_0001>

<llo_original>
// kernel: tpu_custom_call.1
$region0: #{tpu_custom_call.1}
  #allocation0 [shape = 'u32[]', space=smem, size = 0x4, offset = 0x4, fixed_abs, tag = 'smem constant byte address 0x4 - core index']
  #allocation1 [shape = 'u32[144,128]{1,0:T(1,128)}', space=vmem, size = 0x12000, scoped, tag = 'internal scratch']
  %s0 = inlined_call_operand.vmem [shape: bf16[32,32], index: 0, kind: input, shape index: {}]
  %s1 = inlined_call_operand.vmem [shape: f32[32,128], index: 1, kind: input, shape index: {}]
  %s2 = inlined_call_operand.vmem [shape: s32[256,1], index: 2, kind: input, shape index: {}]
  %s3 = inlined_call_operand.hbm [shape: f32[1,128], index: 3, kind: output, shape index: {}]
  %s4 = sld [smem:[#allocation0]]
  $region22: #{tpu_custom_call.1} parent=0
    _
  %s6 = ssub.s32 1, %s4
  %s7 = scalar_select 0, %s6, %s4
  $region1: #{tpu_custom_call.1} parent=0
    #allocation2 [shape = 'u8[512]{0}', space=vmem, size = 0x400, scoped, tag = 'output window, operand 0, single buffered']
    #allocation3 [shape = 's32[1]{0}', space=sflag, size = 0x4, scoped, tag = 'scoped memory for tpu_custom_call.1']
    %8 = vsyncpa [#allocation3], 0
    // Predicated region
    $region2: #{tpu_custom_call.1} parent=1 // pred_check
      _
    $region3: #{tpu_custom_call.1} parent=1 // pred_check_branch
      %10 = sbr.rel (0) target = $region5
    $region4: #{tpu_custom_call.1} parent=1 // pred_region
      _
    $region5: #{tpu_custom_call.1} parent=1 // pred_fallthru
      _
    // Predicated region
    $region6: #{tpu_custom_call.1} parent=1 // pred_check
      _
    $region7: #{tpu_custom_call.1} parent=1 // pred_check_branch
      %12 = sbr.rel (0) target = $region9
    $region8: #{tpu_custom_call.1} parent=1 // pred_region
      _
    $region9: #{tpu_custom_call.1} parent=1 // pred_fallthru
      _
    // Predicated region
    $region10: #{tpu_custom_call.1} parent=1 // pred_check
      _
    $region11: #{tpu_custom_call.1} parent=1 // pred_check_branch
      %14 = sbr.rel (0) target = $region13
    $region12: #{tpu_custom_call.1} parent=1 // pred_region
      _
    $region13: #{tpu_custom_call.1} parent=1 // pred_fallthru
      _
    %v16 = vld [vmem:[%s0] sm:$0xf]
    %v17 = vld [vmem:[%s0 + $0x4] sm:$0xf]
    %v18 = vld [vmem:[%s0 + $0x8] sm:$0xf]
    %v19 = vld [vmem:[%s0 + $0xc] sm:$0xf]
    %v20 = vld [vmem:[%s1] sm:$0xff]
    %v21 = vld [vmem:[%s1 + $0x8] sm:$0xff]
    %v22 = vld [vmem:[%s1 + $0x10] sm:$0xff]
    %v23 = vld [vmem:[%s1 + $0x18] sm:$0xff]
    %v24 = vpack.c.bf16 %v21, %v20
    %v25 = vpack.c.bf16 %v23, %v22
    %v30 = vunpack.c.l.b16 %v16
    %v31 = vunpack.c.l.b16 %v17
    %v32 = vunpack.c.l.b16 %v18
    %v33 = vunpack.c.l.b16 %v19
    %v34 = vpack.c.b16 %v31, %v30
    %v35 = vpack.c.b16 %v33, %v32
    %vm36 = vcmask 261120
    %v38 = vsel %vm36, %v34, 0
    %v41 = vsel %vm36, %v35, 0
    %43 = vmatprep.subr.bf16.mxu0 0
    %44 = vmatpush1.bf16.msra.mxu0 %v24
    %45 = vmatprep.subr.bf16.mxu0 0
    %46 = vmatpush1.bf16.msra.mxu0 %v25
    %47 = vmatprep.subr.bf16.mxu0 0
    %48 = vmatpush1.bf16.msra.mxu0 0
    %49 = vmatprep.subr.bf16.mxu0 0
    %50 = vmatpush1.bf16.msra.mxu0 0
    %51 = vmatprep.subr.bf16.mxu0 0
    %52 = vmatpush1.bf16.msra.mxu0 0
    %53 = vmatprep.subr.bf16.mxu0 0
    %54 = vmatpush1.bf16.msra.mxu0 0
    %55 = vmatprep.subr.bf16.mxu0 0
    %56 = vmatpush1.bf16.msra.mxu0 0
    %57 = vmatprep.subr.bf16.mxu0 0
    %58 = vmatpush1.bf16.msra.mxu0 0
    %59 = vmatprep.subr.bf16.mxu0 0
    %60 = vmatpush1.bf16.msra.mxu0 0
    %61 = vmatprep.subr.bf16.mxu0 0
    %62 = vmatpush1.bf16.msra.mxu0 0
    %63 = vmatprep.subr.bf16.mxu0 0
    %64 = vmatpush1.bf16.msra.mxu0 0
    %65 = vmatprep.subr.bf16.mxu0 0
    %66 = vmatpush1.bf16.msra.mxu0 0
    %67 = vmatprep.subr.bf16.mxu0 0
    %68 = vmatpush1.bf16.msra.mxu0 0
    %69 = vmatprep.subr.bf16.mxu0 0
    %70 = vmatpush1.bf16.msra.mxu0 0
    %71 = vmatprep.subr.bf16.mxu0 0
    %72 = vmatpush1.bf16.msra.mxu0 0
    %73 = vmatprep.subr.bf16.mxu0 0
    %74 = vmatpush1.bf16.msra.mxu0 0
    %75 = vmatprep.mubr.bf16.mxu0 0
    %76 = vmatmul.mubr.bf16.gmra.mrb[0].mxu0 %v38
    %v77 = vpop.f32.mrb[0].mxu0
    %v78 = vadd.f32 0.0, %v77
    %v79 = vpop.f32.mrb[0].mxu0
    %v80 = vpop.f32.mrb[0].mxu0
    %v81 = vadd.f32 0.0, %v80
    %v82 = vpop.f32.mrb[0].mxu0
    %83 = vmatprep.mubr.bf16.mxu0 0
    %84 = vmatmul.mubr.bf16.gmra.mrb[0].mxu0 %v41
    %v85 = vpop.f32.mrb[0].mxu0
    %v86 = vadd.f32 0.0, %v85
    %v87 = vpop.f32.mrb[0].mxu0
    %v88 = vpop.f32.mrb[0].mxu0
    %v89 = vadd.f32 0.0, %v88
    %v90 = vpop.f32.mrb[0].mxu0
    %91 = vdwg.mxu0
    %v92 = vadd.f32 %v20, %v78
    %v93 = vadd.f32 %v21, %v81
    %v94 = vadd.f32 %v22, %v86
    %v95 = vadd.f32 %v23, %v89
    %v96 = vpack.c.bf16 %v81, %v78
    %v97 = vpack.c.bf16 %v89, %v86
    %98 = vmatprep.subr.bf16.mxu0 0
    %99 = vmatpush1.bf16.msra.mxu0 %v96
    %100 = vmatprep.subr.bf16.mxu0 0
    %101 = vmatpush1.bf16.msra.mxu0 %v97
    %102 = vmatprep.subr.bf16.mxu0 0
    %103 = vmatpush1.bf16.msra.mxu0 0
    %104 = vmatprep.subr.bf16.mxu0 0
    %105 = vmatpush1.bf16.msra.mxu0 0
    %106 = vmatprep.subr.bf16.mxu0 0
    %107 = vmatpush1.bf16.msra.mxu0 0
    %108 = vmatprep.subr.bf16.mxu0 0
    %109 = vmatpush1.bf16.msra.mxu0 0
    %110 = vmatprep.subr.bf16.mxu0 0
    %111 = vmatpush1.bf16.msra.mxu0 0
    %112 = vmatprep.subr.bf16.mxu0 0
    %113 = vmatpush1.bf16.msra.mxu0 0
    %114 = vmatprep.subr.bf16.mxu0 0
    %115 = vmatpush1.bf16.msra.mxu0 0
    %116 = vmatprep.subr.bf16.mxu0 0
    %117 = vmatpush1.bf16.msra.mxu0 0
    %118 = vmatprep.subr.bf16.mxu0 0
    %119 = vmatpush1.bf16.msra.mxu0 0
    %120 = vmatprep.subr.bf16.mxu0 0
    %121 = vmatpush1.bf16.msra.mxu0 0
    %122 = vmatprep.subr.bf16.mxu0 0
    %123 = vmatpush1.bf16.msra.mxu0 0
    %124 = vmatprep.subr.bf16.mxu0 0
    %125 = vmatpush1.bf16.msra.mxu0 0
    %126 = vmatprep.subr.bf16.mxu0 0
    %127 = vmatpush1.bf16.msra.mxu0 0
    %128 = vmatprep.subr.bf16.mxu0 0
    %129 = vmatpush1.bf16.msra.mxu0 0
    %130 = vmatprep.mubr.bf16.mxu0 0
    %131 = vmatmul.mubr.bf16.gmra.mrb[0].mxu0 %v38
    %v132 = vpop.f32.mrb[0].mxu0
    %v133 = vadd.f32 0.0, %v132
    %v134 = vpop.f32.mrb[0].mxu0
    %v135 = vpop.f32.mrb[0].mxu0
    %v136 = vadd.f32 0.0, %v135
    %v137 = vpop.f32.mrb[0].mxu0
    %138 = vmatprep.mubr.bf16.mxu0 0
    %139 = vmatmul.mubr.bf16.gmra.mrb[0].mxu0 %v41
    %v140 = vpop.f32.mrb[0].mxu0
    %v141 = vadd.f32 0.0, %v140
    %v142 = vpop.f32.mrb[0].mxu0
    %v143 = vpop.f32.mrb[0].mxu0
    %v144 = vadd.f32 0.0, %v143
    %v145 = vpop.f32.mrb[0].mxu0
    %146 = vdwg.mxu0
    %v147 = vadd.f32 %v92, %v133
    %v148 = vadd.f32 %v93, %v136
    %v149 = vadd.f32 %v94, %v141
    %v150 = vadd.f32 %v95, %v144
    %v151 = vpack.c.bf16 %v136, %v133
    %v152 = vpack.c.bf16 %v144, %v141
    %153 = vmatprep.subr.bf16.mxu0 0
    %154 = vmatpush1.bf16.msra.mxu0 %v151
    %155 = vmatprep.subr.bf16.mxu0 0
    %156 = vmatpush1.bf16.msra.mxu0 %v152
    %157 = vmatprep.subr.bf16.mxu0 0
    %158 = vmatpush1.bf16.msra.mxu0 0
    %159 = vmatprep.subr.bf16.mxu0 0
    %160 = vmatpush1.bf16.msra.mxu0 0
    %161 = vmatprep.subr.bf16.mxu0 0
    %162 = vmatpush1.bf16.msra.mxu0 0
    %163 = vmatprep.subr.bf16.mxu0 0
    %164 = vmatpush1.bf16.msra.mxu0 0
    %165 = vmatprep.subr.bf16.mxu0 0
    %166 = vmatpush1.bf16.msra.mxu0 0
    %167 = vmatprep.subr.bf16.mxu0 0
    %168 = vmatpush1.bf16.msra.mxu0 0
    %169 = vmatprep.subr.bf16.mxu0 0
    %170 = vmatpush1.bf16.msra.mxu0 0
    %171 = vmatprep.subr.bf16.mxu0 0
    %172 = vmatpush1.bf16.msra.mxu0 0
    %173 = vmatprep.subr.bf16.mxu0 0
    %174 = vmatpush1.bf16.msra.mxu0 0
    %175 = vmatprep.subr.bf16.mxu0 0
    %176 = vmatpush1.bf16.msra.mxu0 0
    %177 = vmatprep.subr.bf16.mxu0 0
    %178 = vmatpush1.bf16.msra.mxu0 0
    %179 = vmatprep.subr.bf16.mxu0 0
    %180 = vmatpush1.bf16.msra.mxu0 0
    %181 = vmatprep.subr.bf16.mxu0 0
    %182 = vmatpush1.bf16.msra.mxu0 0
    %183 = vmatprep.subr.bf16.mxu0 0
    %184 = vmatpush1.bf16.msra.mxu0 0
    %185 = vmatprep.mubr.bf16.mxu0 0
    %186 = vmatmul.mubr.bf16.gmra.mrb[0].mxu0 %v38
    %v187 = vpop.f32.mrb[0].mxu0
    %v188 = vadd.f32 0.0, %v187
    %v189 = vpop.f32.mrb[0].mxu0
    %v190 = vpop.f32.mrb[0].mxu0
    %v191 = vadd.f32 0.0, %v190
    %v192 = vpop.f32.mrb[0].mxu0
    %193 = vmatprep.mubr.bf16.mxu0 0
    %194 = vmatmul.mubr.bf16.gmra.mrb[0].mxu0 %v41
    %v195 = vpop.f32.mrb[0].mxu0
    %v196 = vadd.f32 0.0, %v195
    %v197 = vpop.f32.mrb[0].mxu0
    %v198 = vpop.f32.mrb[0].mxu0
    %v199 = vadd.f32 0.0, %v198
    %v200 = vpop.f32.mrb[0].mxu0
    %201 = vdwg.mxu0
    %v202 = vadd.f32 %v147, %v188
    %v203 = vadd.f32 %v148, %v191
    %v204 = vadd.f32 %v149, %v196
    %v205 = vadd.f32 %v150, %v199
    %v206 = vmul.f32 %v202, 0.25
    %v207 = vmul.f32 %v203, 0.25
    %v208 = vmul.f32 %v204, 0.25
    %v209 = vmul.f32 %v205, 0.25
    %v210 = vlaneseq
    %v211 = vand.u32 %v210, 127
    %v212 = vld [vmem:[%s2] sm:$0xff]
    %v213 = vld [vmem:[%s2 + $0x8] sm:$0xff]
    %v214 = vld [vmem:[%s2 + $0x10] sm:$0xff]
    %v215 = vld [vmem:[%s2 + $0x18] sm:$0xff]
    %v216 = vld [vmem:[%s2 + $0x20] sm:$0xff]
    %v217 = vld [vmem:[%s2 + $0x28] sm:$0xff]
    %v218 = vld [vmem:[%s2 + $0x30] sm:$0xff]
    %v219 = vld [vmem:[%s2 + $0x38] sm:$0xff]
    %v220 = vld [vmem:[%s2 + $0x40] sm:$0xff]
    %v221 = vld [vmem:[%s2 + $0x48] sm:$0xff]
    %v222 = vld [vmem:[%s2 + $0x50] sm:$0xff]
    %v223 = vld [vmem:[%s2 + $0x58] sm:$0xff]
    %v224 = vld [vmem:[%s2 + $0x60] sm:$0xff]
    %v225 = vld [vmem:[%s2 + $0x68] sm:$0xff]
    %v226 = vld [vmem:[%s2 + $0x70] sm:$0xff]
    %v227 = vld [vmem:[%s2 + $0x78] sm:$0xff]
    %v228 = vld [vmem:[%s2 + $0x80] sm:$0xff]
    %v229 = vld [vmem:[%s2 + $0x88] sm:$0xff]
    %v230 = vld [vmem:[%s2 + $0x90] sm:$0xff]
    %v231 = vld [vmem:[%s2 + $0x98] sm:$0xff]
    %v232 = vld [vmem:[%s2 + $0xa0] sm:$0xff]
    %v233 = vld [vmem:[%s2 + $0xa8] sm:$0xff]
    %v234 = vld [vmem:[%s2 + $0xb0] sm:$0xff]
    %v235 = vld [vmem:[%s2 + $0xb8] sm:$0xff]
    %v236 = vld [vmem:[%s2 + $0xc0] sm:$0xff]
    %v237 = vld [vmem:[%s2 + $0xc8] sm:$0xff]
    %v238 = vld [vmem:[%s2 + $0xd0] sm:$0xff]
    %v239 = vld [vmem:[%s2 + $0xd8] sm:$0xff]
    %v240 = vld [vmem:[%s2 + $0xe0] sm:$0xff]
    %v241 = vld [vmem:[%s2 + $0xe8] sm:$0xff]
    %v242 = vld [vmem:[%s2 + $0xf0] sm:$0xff]
    %v243 = vld [vmem:[%s2 + $0xf8] sm:$0xff]
    %244 = vset.pattern.permute.xlu0 0
    %245 = vperm.xlu0 %244, %v212
    %v246 = vpop.permute.xlu0 %245
    %247 = vset.pattern.permute.xlu0 0
    %248 = vperm.xlu0 %247, %v213
    %v249 = vpop.permute.xlu0 %248
    %250 = vset.pattern.permute.xlu0 0
    %251 = vperm.xlu0 %250, %v214
    %v252 = vpop.permute.xlu0 %251
    %253 = vset.pattern.permute.xlu0 0
    %254 = vperm.xlu0 %253, %v215
    %v255 = vpop.permute.xlu0 %254
    %256 = vset.pattern.permute.xlu0 0
    %257 = vperm.xlu0 %256, %v216
    %v258 = vpop.permute.xlu0 %257
    %259 = vset.pattern.permute.xlu0 0
    %260 = vperm.xlu0 %259, %v217
    %v261 = vpop.permute.xlu0 %260
    %262 = vset.pattern.permute.xlu0 0
    %263 = vperm.xlu0 %262, %v218
    %v264 = vpop.permute.xlu0 %263
    %265 = vset.pattern.permute.xlu0 0
    %266 = vperm.xlu0 %265, %v219
    %v267 = vpop.permute.xlu0 %266
    %268 = vset.pattern.permute.xlu0 0
    %269 = vperm.xlu0 %268, %v220
    %v270 = vpop.permute.xlu0 %269
    %271 = vset.pattern.permute.xlu0 0
    %272 = vperm.xlu0 %271, %v221
    %v273 = vpop.permute.xlu0 %272
    %274 = vset.pattern.permute.xlu0 0
    %275 = vperm.xlu0 %274, %v222
    %v276 = vpop.permute.xlu0 %275
    %277 = vset.pattern.permute.xlu0 0
    %278 = vperm.xlu0 %277, %v223
    %v279 = vpop.permute.xlu0 %278
    %280 = vset.pattern.permute.xlu0 0
    %281 = vperm.xlu0 %280, %v224
    %v282 = vpop.permute.xlu0 %281
    %283 = vset.pattern.permute.xlu0 0
    %284 = vperm.xlu0 %283, %v225
    %v285 = vpop.permute.xlu0 %284
    %286 = vset.pattern.permute.xlu0 0
    %287 = vperm.xlu0 %286, %v226
    %v288 = vpop.permute.xlu0 %287
    %289 = vset.pattern.permute.xlu0 0
    %290 = vperm.xlu0 %289, %v227
    %v291 = vpop.permute.xlu0 %290
    %292 = vset.pattern.permute.xlu0 0
    %293 = vperm.xlu0 %292, %v228
    %v294 = vpop.permute.xlu0 %293
    %295 = vset.pattern.permute.xlu0 0
    %296 = vperm.xlu0 %295, %v229
    %v297 = vpop.permute.xlu0 %296
    %298 = vset.pattern.permute.xlu0 0
    %299 = vperm.xlu0 %298, %v230
    %v300 = vpop.permute.xlu0 %299
    %301 = vset.pattern.permute.xlu0 0
    %302 = vperm.xlu0 %301, %v231
    %v303 = vpop.permute.xlu0 %302
    %304 = vset.pattern.permute.xlu0 0
    %305 = vperm.xlu0 %304, %v232
    %v306 = vpop.permute.xlu0 %305
    %307 = vset.pattern.permute.xlu0 0
    %308 = vperm.xlu0 %307, %v233
    %v309 = vpop.permute.xlu0 %308
    %310 = vset.pattern.permute.xlu0 0
    %311 = vperm.xlu0 %310, %v234
    %v312 = vpop.permute.xlu0 %311
    %313 = vset.pattern.permute.xlu0 0
    %314 = vperm.xlu0 %313, %v235
    %v315 = vpop.permute.xlu0 %314
    %316 = vset.pattern.permute.xlu0 0
    %317 = vperm.xlu0 %316, %v236
    %v318 = vpop.permute.xlu0 %317
    %319 = vset.pattern.permute.xlu0 0
    %320 = vperm.xlu0 %319, %v237
    %v321 = vpop.permute.xlu0 %320
    %322 = vset.pattern.permute.xlu0 0
    %323 = vperm.xlu0 %322, %v238
    %v324 = vpop.permute.xlu0 %323
    %325 = vset.pattern.permute.xlu0 0
    %326 = vperm.xlu0 %325, %v239
    %v327 = vpop.permute.xlu0 %326
    %328 = vset.pattern.permute.xlu0 0
    %329 = vperm.xlu0 %328, %v240
    %v330 = vpop.permute.xlu0 %329
    %331 = vset.pattern.permute.xlu0 0
    %332 = vperm.xlu0 %331, %v241
    %v333 = vpop.permute.xlu0 %332
    %334 = vset.pattern.permute.xlu0 0
    %335 = vperm.xlu0 %334, %v242
    %v336 = vpop.permute.xlu0 %335
    %337 = vset.pattern.permute.xlu0 0
    %338 = vperm.xlu0 %337, %v243
    %v339 = vpop.permute.xlu0 %338
    %vm340 = vcmp.eq.s32.totalorder %v211, %v246
    %vm341 = vcmp.eq.s32.totalorder %v211, %v249
    %vm342 = vcmp.eq.s32.totalorder %v211, %v252
    %vm343 = vcmp.eq.s32.totalorder %v211, %v255
    %vm344 = vcmp.eq.s32.totalorder %v211, %v258
    %vm345 = vcmp.eq.s32.totalorder %v211, %v261
    %vm346 = vcmp.eq.s32.totalorder %v211, %v264
    %vm347 = vcmp.eq.s32.totalorder %v211, %v267
    %vm348 = vcmp.eq.s32.totalorder %v211, %v270
    %vm349 = vcmp.eq.s32.totalorder %v211, %v273
    %vm350 = vcmp.eq.s32.totalorder %v211, %v276
    %vm351 = vcmp.eq.s32.totalorder %v211, %v279
    %vm352 = vcmp.eq.s32.totalorder %v211, %v282
    %vm353 = vcmp.eq.s32.totalorder %v211, %v285
    %vm354 = vcmp.eq.s32.totalorder %v211, %v288
    %vm355 = vcmp.eq.s32.totalorder %v211, %v291
    %vm356 = vcmp.eq.s32.totalorder %v211, %v294
    %vm357 = vcmp.eq.s32.totalorder %v211, %v297
    %vm358 = vcmp.eq.s32.totalorder %v211, %v300
    %vm359 = vcmp.eq.s32.totalorder %v211, %v303
    %vm360 = vcmp.eq.s32.totalorder %v211, %v306
    %vm361 = vcmp.eq.s32.totalorder %v211, %v309
    %vm362 = vcmp.eq.s32.totalorder %v211, %v312
    %vm363 = vcmp.eq.s32.totalorder %v211, %v315
    %vm364 = vcmp.eq.s32.totalorder %v211, %v318
    %vm365 = vcmp.eq.s32.totalorder %v211, %v321
    %vm366 = vcmp.eq.s32.totalorder %v211, %v324
    %vm367 = vcmp.eq.s32.totalorder %v211, %v327
    %vm368 = vcmp.eq.s32.totalorder %v211, %v330
    %vm369 = vcmp.eq.s32.totalorder %v211, %v333
    %vm370 = vcmp.eq.s32.totalorder %v211, %v336
    %vm371 = vcmp.eq.s32.totalorder %v211, %v339
    %v372 = vsel %vm340, 1, 0
    %v373 = vsel %vm341, 1, 0
    %v374 = vsel %vm342, 1, 0
    %v375 = vsel %vm343, 1, 0
    %v376 = vsel %vm344, 1, 0
    %v377 = vsel %vm345, 1, 0
    %v378 = vsel %vm346, 1, 0
    %v379 = vsel %vm347, 1, 0
    %v380 = vsel %vm348, 1, 0
    %v381 = vsel %vm349, 1, 0
    %v382 = vsel %vm350, 1, 0
    %v383 = vsel %vm351, 1, 0
    %v384 = vsel %vm352, 1, 0
    %v385 = vsel %vm353, 1, 0
    %v386 = vsel %vm354, 1, 0
    %v387 = vsel %vm355, 1, 0
    %v388 = vsel %vm356, 1, 0
    %v389 = vsel %vm357, 1, 0
    %v390 = vsel %vm358, 1, 0
    %v391 = vsel %vm359, 1, 0
    %v392 = vsel %vm360, 1, 0
    %v393 = vsel %vm361, 1, 0
    %v394 = vsel %vm362, 1, 0
    %v395 = vsel %vm363, 1, 0
    %v396 = vsel %vm364, 1, 0
    %v397 = vsel %vm365, 1, 0
    %v398 = vsel %vm366, 1, 0
    %v399 = vsel %vm367, 1, 0
    %v400 = vsel %vm368, 1, 0
    %v401 = vsel %vm369, 1, 0
    %v402 = vsel %vm370, 1, 0
    %v403 = vsel %vm371, 1, 0
    %v404 = vcvt.s32.f32 %v372
    %v405 = vcvt.s32.f32 %v373
    %v406 = vcvt.s32.f32 %v374
    %v407 = vcvt.s32.f32 %v375
    %v408 = vcvt.s32.f32 %v376
    %v409 = vcvt.s32.f32 %v377
    %v410 = vcvt.s32.f32 %v378
    %v411 = vcvt.s32.f32 %v379
    %v412 = vcvt.s32.f32 %v380
    %v413 = vcvt.s32.f32 %v381
    %v414 = vcvt.s32.f32 %v382
    %v415 = vcvt.s32.f32 %v383
    %v416 = vcvt.s32.f32 %v384
    %v417 = vcvt.s32.f32 %v385
    %v418 = vcvt.s32.f32 %v386
    %v419 = vcvt.s32.f32 %v387
    %v420 = vcvt.s32.f32 %v388
    %v421 = vcvt.s32.f32 %v389
    %v422 = vcvt.s32.f32 %v390
    %v423 = vcvt.s32.f32 %v391
    %v424 = vcvt.s32.f32 %v392
    %v425 = vcvt.s32.f32 %v393
    %v426 = vcvt.s32.f32 %v394
    %v427 = vcvt.s32.f32 %v395
    %v428 = vcvt.s32.f32 %v396
    %v429 = vcvt.s32.f32 %v397
    %v430 = vcvt.s32.f32 %v398
    %v431 = vcvt.s32.f32 %v399
    %v432 = vcvt.s32.f32 %v400
    %v433 = vcvt.s32.f32 %v401
    %v434 = vcvt.s32.f32 %v402
    %v435 = vcvt.s32.f32 %v403
    %v437 = vsel %vm36, %v404, 0
    %v440 = vsel %vm36, %v405, 0
    %v443 = vsel %vm36, %v406, 0
    %v446 = vsel %vm36, %v407, 0
    %v449 = vsel %vm36, %v408, 0
    %v452 = vsel %vm36, %v409, 0
    %v455 = vsel %vm36, %v410, 0
    %v458 = vsel %vm36, %v411, 0
    %v461 = vsel %vm36, %v412, 0
    %v464 = vsel %vm36, %v413, 0
    %v467 = vsel %vm36, %v414, 0
    %v470 = vsel %vm36, %v415, 0
    %v473 = vsel %vm36, %v416, 0
    %v476 = vsel %vm36, %v417, 0
    %v479 = vsel %vm36, %v418, 0
    %v482 = vsel %vm36, %v419, 0
    %v485 = vsel %vm36, %v420, 0
    %v488 = vsel %vm36, %v421, 0
    %v491 = vsel %vm36, %v422, 0
    %v494 = vsel %vm36, %v423, 0
    %v497 = vsel %vm36, %v424, 0
    %v500 = vsel %vm36, %v425, 0
    %v503 = vsel %vm36, %v426, 0
    %v506 = vsel %vm36, %v427, 0
    %v509 = vsel %vm36, %v428, 0
    %v512 = vsel %vm36, %v429, 0
    %v515 = vsel %vm36, %v430, 0
    %v518 = vsel %vm36, %v431, 0
    %v521 = vsel %vm36, %v432, 0
    %v524 = vsel %vm36, %v433, 0
    %v527 = vsel %vm36, %v434, 0
    %v530 = vsel %vm36, %v435, 0
    %532 = vmatprep.subr.mxu0 0.0
    %533 = vmatpush1.msra.mxu0 %v206
    %534 = vmatprep.subr.mxu0 0.0
    %535 = vmatpush1.msra.mxu0 %v207
    %536 = vmatprep.subr.mxu0 0.0
    %537 = vmatpush1.msra.mxu0 %v208
    %538 = vmatprep.subr.mxu0 0.0
    %539 = vmatpush1.msra.mxu0 %v209
    %540 = vmatprep.subr.mxu0 0.0
    %541 = vmatpush1.msra.mxu0 0.0
    %542 = vmatprep.subr.mxu0 0.0
    %543 = vmatpush1.msra.mxu0 0.0
    %544 = vmatprep.subr.mxu0 0.0
    %545 = vmatpush1.msra.mxu0 0.0
    %546 = vmatprep.subr.mxu0 0.0
    %547 = vmatpush1.msra.mxu0 0.0
    %548 = vmatprep.subr.mxu0 0.0
    %549 = vmatpush1.msra.mxu0 0.0
    %550 = vmatprep.subr.mxu0 0.0
    %551 = vmatpush1.msra.mxu0 0.0
    %552 = vmatprep.subr.mxu0 0.0
    %553 = vmatpush1.msra.mxu0 0.0
    %554 = vmatprep.subr.mxu0 0.0
    %555 = vmatpush1.msra.mxu0 0.0
    %556 = vmatprep.subr.mxu0 0.0
    %557 = vmatpush1.msra.mxu0 0.0
    %558 = vmatprep.subr.mxu0 0.0
    %559 = vmatpush1.msra.mxu0 0.0
    %560 = vmatprep.subr.mxu0 0.0
    %561 = vmatpush1.msra.mxu0 0.0
    %562 = vmatprep.subr.mxu0 0.0
    %563 = vmatpush1.msra.mxu0 0.0
    %564 = vmatprep.subr.mxu0 0.0
    %565 = vmatpush1.msra.mxu0 0.0
    %566 = vmatprep.subr.mxu0 0.0
    %567 = vmatpush1.msra.mxu0 0.0
    %568 = vmatprep.subr.mxu0 0.0
    %569 = vmatpush1.msra.mxu0 0.0
    %570 = vmatprep.subr.mxu0 0.0
    %571 = vmatpush1.msra.mxu0 0.0
    %572 = vmatprep.subr.mxu0 0.0
    %573 = vmatpush1.msra.mxu0 0.0
    %574 = vmatprep.subr.mxu0 0.0
    %575 = vmatpush1.msra.mxu0 0.0
    %576 = vmatprep.subr.mxu0 0.0
    %577 = vmatpush1.msra.mxu0 0.0
    %578 = vmatprep.subr.mxu0 0.0
    %579 = vmatpush1.msra.mxu0 0.0
    %580 = vmatprep.subr.mxu0 0.0
    %581 = vmatpush1.msra.mxu0 0.0
    %582 = vmatprep.subr.mxu0 0.0
    %583 = vmatpush1.msra.mxu0 0.0
    %584 = vmatprep.subr.mxu0 0.0
    %585 = vmatpush1.msra.mxu0 0.0
    %586 = vmatprep.subr.mxu0 0.0
    %587 = vmatpush1.msra.mxu0 0.0
    %588 = vmatprep.subr.mxu0 0.0
    %589 = vmatpush1.msra.mxu0 0.0
    %590 = vmatprep.subr.mxu0 0.0
    %591 = vmatpush1.msra.mxu0 0.0
    %592 = vmatprep.subr.mxu0 0.0
    %593 = vmatpush1.msra.mxu0 0.0
    %594 = vmatprep.subr.mxu0 0.0
    %595 = vmatpush1.msra.mxu0 0.0
    %596 = vmatprep.mubr.f32.mxu0 0.0
    %597 = vmatmul.mubr.f32.gmra.mrb[0].mxu0 %v437
    %v598 = vpop.f32.mrb[0].mxu0
    %v599 = vadd.f32 0.0, %v598
    %v600 = vpop.f32.mrb[0].mxu0
    %601 = vmatprep.mubr.f32.mxu0 0.0
    %602 = vmatmul.mubr.f32.gmra.mrb[0].mxu0 %v440
    %v603 = vpop.f32.mrb[0].mxu0
    %v604 = vadd.f32 0.0, %v603
    %v605 = vpop.f32.mrb[0].mxu0
    %606 = vmatprep.mubr.f32.mxu0 0.0
    %607 = vmatmul.mubr.f32.gmra.mrb[0].mxu0 %v443
    %v608 = vpop.f32.mrb[0].mxu0
    %v609 = vadd.f32 0.0, %v608
    %v610 = vpop.f32.mrb[0].mxu0
    %611 = vmatprep.mubr.f32.mxu0 0.0
    %612 = vmatmul.mubr.f32.gmra.mrb[0].mxu0 %v446
    %v613 = vpop.f32.mrb[0].mxu0
    %v614 = vadd.f32 0.0, %v613
    %v615 = vpop.f32.mrb[0].mxu0
    %616 = vmatprep.mubr.f32.mxu0 0.0
    %617 = vmatmul.mubr.f32.gmra.mrb[0].mxu0 %v449
    %v618 = vpop.f32.mrb[0].mxu0
    %v619 = vadd.f32 0.0, %v618
    %v620 = vpop.f32.mrb[0].mxu0
    %621 = vmatprep.mubr.f32.mxu0 0.0
    %622 = vmatmul.mubr.f32.gmra.mrb[0].mxu0 %v452
    %v623 = vpop.f32.mrb[0].mxu0
    %v624 = vadd.f32 0.0, %v623
    %v625 = vpop.f32.mrb[0].mxu0
    %626 = vmatprep.mubr.f32.mxu0 0.0
    %627 = vmatmul.mubr.f32.gmra.mrb[0].mxu0 %v455
    %v628 = vpop.f32.mrb[0].mxu0
    %v629 = vadd.f32 0.0, %v628
    %v630 = vpop.f32.mrb[0].mxu0
    %631 = vmatprep.mubr.f32.mxu0 0.0
    %632 = vmatmul.mubr.f32.gmra.mrb[0].mxu0 %v458
    %v633 = vpop.f32.mrb[0].mxu0
    %v634 = vadd.f32 0.0, %v633
    %v635 = vpop.f32.mrb[0].mxu0
    %636 = vmatprep.mubr.f32.mxu0 0.0
    %637 = vmatmul.mubr.f32.gmra.mrb[0].mxu0 %v461
    %v638 = vpop.f32.mrb[0].mxu0
    %v639 = vadd.f32 0.0, %v638
    %v640 = vpop.f32.mrb[0].mxu0
    %641 = vmatprep.mubr.f32.mxu0 0.0
    %642 = vmatmul.mubr.f32.gmra.mrb[0].mxu0 %v464
    %v643 = vpop.f32.mrb[0].mxu0
    %v644 = vadd.f32 0.0, %v643
    %v645 = vpop.f32.mrb[0].mxu0
    %646 = vmatprep.mubr.f32.mxu0 0.0
    %647 = vmatmul.mubr.f32.gmra.mrb[0].mxu0 %v467
    %v648 = vpop.f32.mrb[0].mxu0
    %v649 = vadd.f32 0.0, %v648
    %v650 = vpop.f32.mrb[0].mxu0
    %651 = vmatprep.mubr.f32.mxu0 0.0
    %652 = vmatmul.mubr.f32.gmra.mrb[0].mxu0 %v470
    %v653 = vpop.f32.mrb[0].mxu0
    %v654 = vadd.f32 0.0, %v653
    %v655 = vpop.f32.mrb[0].mxu0
    %656 = vmatprep.mubr.f32.mxu0 0.0
    %657 = vmatmul.mubr.f32.gmra.mrb[0].mxu0 %v473
    %v658 = vpop.f32.mrb[0].mxu0
    %v659 = vadd.f32 0.0, %v658
    %v660 = vpop.f32.mrb[0].mxu0
    %661 = vmatprep.mubr.f32.mxu0 0.0
    %662 = vmatmul.mubr.f32.gmra.mrb[0].mxu0 %v476
    %v663 = vpop.f32.mrb[0].mxu0
    %v664 = vadd.f32 0.0, %v663
    %v665 = vpop.f32.mrb[0].mxu0
    %666 = vmatprep.mubr.f32.mxu0 0.0
    %667 = vmatmul.mubr.f32.gmra.mrb[0].mxu0 %v479
    %v668 = vpop.f32.mrb[0].mxu0
    %v669 = vadd.f32 0.0, %v668
    %v670 = vpop.f32.mrb[0].mxu0
    %671 = vmatprep.mubr.f32.mxu0 0.0
    %672 = vmatmul.mubr.f32.gmra.mrb[0].mxu0 %v482
    %v673 = vpop.f32.mrb[0].mxu0
    %v674 = vadd.f32 0.0, %v673
    %v675 = vpop.f32.mrb[0].mxu0
    %676 = vmatprep.mubr.f32.mxu0 0.0
    %677 = vmatmul.mubr.f32.gmra.mrb[0].mxu0 %v485
    %v678 = vpop.f32.mrb[0].mxu0
    %v679 = vadd.f32 0.0, %v678
    %v680 = vpop.f32.mrb[0].mxu0
    %681 = vmatprep.mubr.f32.mxu0 0.0
    %682 = vmatmul.mubr.f32.gmra.mrb[0].mxu0 %v488
    %v683 = vpop.f32.mrb[0].mxu0
    %v684 = vadd.f32 0.0, %v683
    %v685 = vpop.f32.mrb[0].mxu0
    %686 = vmatprep.mubr.f32.mxu0 0.0
    %687 = vmatmul.mubr.f32.gmra.mrb[0].mxu0 %v491
    %v688 = vpop.f32.mrb[0].mxu0
    %v689 = vadd.f32 0.0, %v688
    %v690 = vpop.f32.mrb[0].mxu0
    %691 = vmatprep.mubr.f32.mxu0 0.0
    %692 = vmatmul.mubr.f32.gmra.mrb[0].mxu0 %v494
    %v693 = vpop.f32.mrb[0].mxu0
    %v694 = vadd.f32 0.0, %v693
    %v695 = vpop.f32.mrb[0].mxu0
    %696 = vmatprep.mubr.f32.mxu0 0.0
    %697 = vmatmul.mubr.f32.gmra.mrb[0].mxu0 %v497
    %v698 = vpop.f32.mrb[0].mxu0
    %v699 = vadd.f32 0.0, %v698
    %v700 = vpop.f32.mrb[0].mxu0
    %701 = vmatprep.mubr.f32.mxu0 0.0
    %702 = vmatmul.mubr.f32.gmra.mrb[0].mxu0 %v500
    %v703 = vpop.f32.mrb[0].mxu0
    %v704 = vadd.f32 0.0, %v703
    %v705 = vpop.f32.mrb[0].mxu0
    %706 = vmatprep.mubr.f32.mxu0 0.0
    %707 = vmatmul.mubr.f32.gmra.mrb[0].mxu0 %v503
    %v708 = vpop.f32.mrb[0].mxu0
    %v709 = vadd.f32 0.0, %v708
    %v710 = vpop.f32.mrb[0].mxu0
    %711 = vmatprep.mubr.f32.mxu0 0.0
    %712 = vmatmul.mubr.f32.gmra.mrb[0].mxu0 %v506
    %v713 = vpop.f32.mrb[0].mxu0
    %v714 = vadd.f32 0.0, %v713
    %v715 = vpop.f32.mrb[0].mxu0
    %716 = vmatprep.mubr.f32.mxu0 0.0
    %717 = vmatmul.mubr.f32.gmra.mrb[0].mxu0 %v509
    %v718 = vpop.f32.mrb[0].mxu0
    %v719 = vadd.f32 0.0, %v718
    %v720 = vpop.f32.mrb[0].mxu0
    %721 = vmatprep.mubr.f32.mxu0 0.0
    %722 = vmatmul.mubr.f32.gmra.mrb[0].mxu0 %v512
    %v723 = vpop.f32.mrb[0].mxu0
    %v724 = vadd.f32 0.0, %v723
    %v725 = vpop.f32.mrb[0].mxu0
    %726 = vmatprep.mubr.f32.mxu0 0.0
    %727 = vmatmul.mubr.f32.gmra.mrb[0].mxu0 %v515
    %v728 = vpop.f32.mrb[0].mxu0
    %v729 = vadd.f32 0.0, %v728
    %v730 = vpop.f32.mrb[0].mxu0
    %731 = vmatprep.mubr.f32.mxu0 0.0
    %732 = vmatmul.mubr.f32.gmra.mrb[0].mxu0 %v518
    %v733 = vpop.f32.mrb[0].mxu0
    %v734 = vadd.f32 0.0, %v733
    %v735 = vpop.f32.mrb[0].mxu0
    %736 = vmatprep.mubr.f32.mxu0 0.0
    %737 = vmatmul.mubr.f32.gmra.mrb[0].mxu0 %v521
    %v738 = vpop.f32.mrb[0].mxu0
    %v739 = vadd.f32 0.0, %v738
    %v740 = vpop.f32.mrb[0].mxu0
    %741 = vmatprep.mubr.f32.mxu0 0.0
    %742 = vmatmul.mubr.f32.gmra.mrb[0].mxu0 %v524
    %v743 = vpop.f32.mrb[0].mxu0
    %v744 = vadd.f32 0.0, %v743
    %v745 = vpop.f32.mrb[0].mxu0
    %746 = vmatprep.mubr.f32.mxu0 0.0
    %747 = vmatmul.mubr.f32.gmra.mrb[0].mxu0 %v527
    %v748 = vpop.f32.mrb[0].mxu0
    %v749 = vadd.f32 0.0, %v748
    %v750 = vpop.f32.mrb[0].mxu0
    %751 = vmatprep.mubr.f32.mxu0 0.0
    %752 = vmatmul.mubr.f32.gmra.mrb[0].mxu0 %v530
    %v753 = vpop.f32.mrb[0].mxu0
    %v754 = vadd.f32 0.0, %v753
    %v755 = vpop.f32.mrb[0].mxu0
    %756 = vdwg.mxu0
    %v757 = vmul.f32 %v599, %v679
    %v758 = vmul.f32 %v604, %v684
    %v759 = vmul.f32 %v609, %v689
    %v760 = vmul.f32 %v614, %v694
    %v761 = vmul.f32 %v619, %v699
    %v762 = vmul.f32 %v624, %v704
    %v763 = vmul.f32 %v629, %v709
    %v764 = vmul.f32 %v634, %v714
    %v765 = vmul.f32 %v639, %v719
    %v766 = vmul.f32 %v644, %v724
    %v767 = vmul.f32 %v649, %v729
    %v768 = vmul.f32 %v654, %v734
    %v769 = vmul.f32 %v659, %v739
    %v770 = vmul.f32 %v664, %v744
    %v771 = vmul.f32 %v669, %v749
    %v772 = vmul.f32 %v674, %v754
    %773 = vmatprep.subr.mxu0 0.0
    %774 = vmatpush1.xpose.msra.mxu0 %v757
    %775 = vmatprep.subr.mxu0 0.0
    %776 = vmatpush1.xpose.msra.mxu0 %v758
    %777 = vmatprep.subr.mxu0 0.0
    %778 = vmatpush1.xpose.msra.mxu0 %v759
    %779 = vmatprep.subr.mxu0 0.0
    %780 = vmatpush1.xpose.msra.mxu0 %v760
    %781 = vmatprep.subr.mxu0 0.0
    %782 = vmatpush1.xpose.msra.mxu0 %v761
    %783 = vmatprep.subr.mxu0 0.0
    %784 = vmatpush1.xpose.msra.mxu0 %v762
    %785 = vmatprep.subr.mxu0 0.0
    %786 = vmatpush1.xpose.msra.mxu0 %v763
    %787 = vmatprep.subr.mxu0 0.0
    %788 = vmatpush1.xpose.msra.mxu0 %v764
    %789 = vmatprep.subr.mxu0 0.0
    %790 = vmatpush1.xpose.msra.mxu0 %v765
    %791 = vmatprep.subr.mxu0 0.0
    %792 = vmatpush1.xpose.msra.mxu0 %v766
    %793 = vmatprep.subr.mxu0 0.0
    %794 = vmatpush1.xpose.msra.mxu0 %v767
    %795 = vmatprep.subr.mxu0 0.0
    %796 = vmatpush1.xpose.msra.mxu0 %v768
    %797 = vmatprep.subr.mxu0 0.0
    %798 = vmatpush1.xpose.msra.mxu0 %v769
    %799 = vmatprep.subr.mxu0 0.0
    %800 = vmatpush1.xpose.msra.mxu0 %v770
    %801 = vmatprep.subr.mxu0 0.0
    %802 = vmatpush1.xpose.msra.mxu0 %v771
    %803 = vmatprep.subr.mxu0 0.0
    %804 = vmatpush1.xpose.msra.mxu0 %v772
    %805 = vmatprep.subr.mxu0 0.0
    %806 = vmatpush1.xpose.msra.mxu0 0.0
    %807 = vmatprep.subr.mxu0 0.0
    %808 = vmatpush1.xpose.msra.mxu0 0.0
    %809 = vmatprep.subr.mxu0 0.0
    %810 = vmatpush1.xpose.msra.mxu0 0.0
    %811 = vmatprep.subr.mxu0 0.0
    %812 = vmatpush1.xpose.msra.mxu0 0.0
    %813 = vmatprep.subr.mxu0 0.0
    %814 = vmatpush1.xpose.msra.mxu0 0.0
    %815 = vmatprep.subr.mxu0 0.0
    %816 = vmatpush1.xpose.msra.mxu0 0.0
    %817 = vmatprep.subr.mxu0 0.0
    %818 = vmatpush1.xpose.msra.mxu0 0.0
    %819 = vmatprep.subr.mxu0 0.0
    %820 = vmatpush1.xpose.msra.mxu0 0.0
    %821 = vmatprep.subr.mxu0 0.0
    %822 = vmatpush1.xpose.msra.mxu0 0.0
    %823 = vmatprep.subr.mxu0 0.0
    %824 = vmatpush1.xpose.msra.mxu0 0.0
    %825 = vmatprep.subr.mxu0 0.0
    %826 = vmatpush1.xpose.msra.mxu0 0.0
    %827 = vmatprep.subr.mxu0 0.0
    %828 = vmatpush1.xpose.msra.mxu0 0.0
    %829 = vmatprep.subr.mxu0 0.0
    %830 = vmatpush1.xpose.msra.mxu0 0.0
    %831 = vmatprep.subr.mxu0 0.0
    %832 = vmatpush1.xpose.msra.mxu0 0.0
    %833 = vmatprep.subr.mxu0 0.0
    %834 = vmatpush1.xpose.msra.mxu0 0.0
    %835 = vmatprep.subr.mxu0 0.0
    %836 = vmatpush1.xpose.msra.mxu0 0.0
    %837 = vmatprep.mubr.f32.mxu0 0.0
    %838 = vmatmul.mubr.f32.gmra.mrb[0].mxu0 1.0
    %v839 = vpop.f32.mrb[0].mxu0
    %v840 = vadd.f32 0.0, %v839
    %v841 = vpop.f32.mrb[0].mxu0
    %842 = vdwg.mxu0
    %843 = vst [vmem:[#allocation2] sm:$0x1] %v840
    // Predicated region
    $region14: #{tpu_custom_call.1} parent=1 // pred_check
      _
    $region15: #{tpu_custom_call.1} parent=1 // pred_check_branch
      %845 = sbr.rel (0) target = $region17
    $region16: #{tpu_custom_call.1} parent=1 // pred_region
      %s847 = ssub.s32 16, 16
      %848 = vsyncadd [#allocation3], %s847
      %s850 = sshll.u32 [#allocation2], 4
      %s851 = int_to_ptr.vmem [resolvable:$true] %s850
      %853 = dma.vmem_to_hbm [thread:$0]  %s851, 16, %s3, [#allocation3]
    $region17: #{tpu_custom_call.1} parent=1 // pred_fallthru
      _
    // Predicated region
    $region18: #{tpu_custom_call.1} parent=1 // pred_check
      _
    $region19: #{tpu_custom_call.1} parent=1 // pred_check_branch
      %855 = sbr.rel (0) target = $region21
    $region20: #{tpu_custom_call.1} parent=1 // pred_region
      %856 = dma.done [#allocation3], 16
    $region21: #{tpu_custom_call.1} parent=1 // pred_fallthru
      _
    %857 = vsyncpa [#allocation3], 1

</llo_original>
